<compile_context>
chip_gen: v7x
topology: tpu7x:2x2x1
jax: 0.10.0
libtpu: 0.0.40
codegen_flags: <defaults>
</compile_context>

<pallas_src>
from functools import partial

import jax
import jax.numpy as jnp
from jax import lax
from jax.experimental import pallas as pl
from jax.experimental.pallas import tpu as pltpu


def _round_up(x, m):
    return ((x + m - 1) // m) * m


def _leaky_relu(v):
    return jnp.where(v >= 0, v, 0.2 * v)


# ----------------------------------------------------------------------------
# Pallas kernel: LeakyReLU(0.2) + stride-`ratio` ConvTranspose1d (K = 2*ratio),
# one fused MXU matmul per (batch, L-tile) block.
# ----------------------------------------------------------------------------
def _upsample_kernel(x_ref, halo_ref, w_ref, b_ref, o_ref, *,
                     length, tile_l, precision):
    # x_ref    : (1, Cin, TL)         f32 input tile
    # halo_ref : (B*T, Cin, 2)        resident f32 [left | right] neighbour cols
    # w_ref    : (ratio*Cout, 3*Cin)  fused weights [W_center | W_prev | W_next]
    # b_ref    : (ratio*Cout, 1)      f32 bias (tiled over phases)
    # o_ref    : (1, ratio*Cout, TL)  phase-major output tile (lane-dense)
    cdt = w_ref.dtype                       # MXU operand dtype (bf16 or f32)
    b_idx = pl.program_id(0)
    t_idx = pl.program_id(1)
    n_t = pl.num_programs(1)

    x = x_ref[0]                            # (Cin, TL) f32
    cin, tl = x.shape

    # Zero columns past the true length (ragged last tile; also guards against
    # garbage in the partially-read edge block).  Static no-op when TL | L.
    if length % tile_l != 0:
        col = t_idx * tile_l + lax.broadcasted_iota(jnp.int32, (cin, tl), 1)
        x = jnp.where(col < length, x, 0.0)

    xa = _leaky_relu(x)                                     # (Cin, TL) f32

    halo = _leaky_relu(halo_ref[b_idx * n_t + t_idx])       # (Cin, 2)  f32
    left = halo[:, 0:1]                     # x[:, tile_start - 1]  (or 0)
    right = halo[:, 1:2]                    # x[:, tile_end]        (or 0)

    # Shifted activations with cross-tile halo columns (exact at boundaries).
    x_prev = jnp.concatenate([left, xa[:, : tl - 1]], axis=1)   # x[:, q-1]
    x_next = jnp.concatenate([xa[:, 1:], right], axis=1)        # x[:, q+1]

    # Stacked activations -> contraction dim 3*Cin; single cast for the MXU.
    xs = jnp.concatenate([xa, x_prev, x_next], axis=0).astype(cdt)

    acc = jnp.dot(w_ref[...], xs, preferred_element_type=jnp.float32,
                  precision=precision)                      # (ratio*Cout, TL)
    bias = jnp.broadcast_to(b_ref[...], acc.shape)          # hoisted, one add
    o_ref[0] = (acc + bias).astype(o_ref.dtype)


def upsample_layer(x, weight, bias, *, ratio, tile_l=None,
                   compute_dtype=jnp.bfloat16, out_dtype=None):
    """Forward pass of UpsampleLayer (ratio > 1 branch, 'identity' norm).

    x      : (B, Cin, L)            float32, NCL layout
    weight : (Cin, Cout, 2*ratio)   PyTorch ConvTranspose1d weight layout
    bias   : (Cout,)
    returns: (B, Cout, L*ratio)
    """
    # TODO(synk): ratio == 1 branch (Conv1d k=3 'same'), odd ratios and the
    # 'weight_norm' mode are not implemented (module default is 'identity';
    # RAVE uses even upsample ratios).
    assert ratio > 1 and ratio % 2 == 0, "kernel implements even upsample ratios"
    B, Cin, L = x.shape
    _, Cout, K = weight.shape
    assert K == 2 * ratio
    pad = ratio // 2
    Lout = (L - 1) * ratio - 2 * pad + K          # == L * ratio for even ratio
    M = ratio * Cout
    out_dtype = x.dtype if out_dtype is None else out_dtype

    cd_size = jnp.dtype(compute_dtype).itemsize
    x_size = jnp.dtype(x.dtype).itemsize
    o_size = jnp.dtype(out_dtype).itemsize

    # ---- L tile: lane-aligned, sized from a VMEM budget (not full length). --
    if tile_l is None:
        per_col = (2 * Cin * x_size             # x double buffer
                   + 2 * M * o_size             # output double buffer
                   + 3 * Cin * (4 + cd_size)    # stacked activations (+cast)
                   + M * 4                      # f32 accumulator
                   + 2 * Cin * 4)               # shifted temporaries
        tile_l = max(128, min(4096, int((24 << 20) // max(per_col, 1))))
    TL = max(128, min((tile_l // 128) * 128, _round_up(L, 128)))
    T = pl.cdiv(L, TL)
    Lp = T * TL

    # ---- tiny resident halo side input: halo[b*T+t] = [x[:,t*TL-1], x[:,(t+1)*TL]]
    zcol = jnp.zeros((B, Cin, 1), x.dtype)
    if T > 1:
        edge_l = [t * TL - 1 for t in range(1, T)]        # all < L
        edge_r = [t * TL for t in range(1, T)]            # all < L
        lefts = jnp.concatenate([zcol, x[:, :, edge_l]], axis=2)    # (B,Cin,T)
        rights = jnp.concatenate([x[:, :, edge_r], zcol], axis=2)   # (B,Cin,T)
    else:
        lefts, rights = zcol, zcol
    halo = jnp.stack([lefts, rights], axis=-1)            # (B, Cin, T, 2)
    halo = jnp.transpose(halo, (0, 2, 1, 3)).reshape(B * T, Cin, 2)

    # ---- fused weights: (ratio*Cout, 3*Cin) = [W_center | W_prev | W_next]. --
    wT = jnp.transpose(weight, (2, 1, 0))                 # (K, Cout, Cin)
    zblk = jnp.zeros((Cout, Cin), weight.dtype)
    rows = []
    for r in range(ratio):
        kA = r + pad
        wc = wT[kA]
        wp = wT[kA + ratio] if kA < ratio else zblk
        wn = wT[kA - ratio] if kA >= ratio else zblk
        rows.append(jnp.concatenate([wc, wp, wn], axis=1))          # (Cout, 3Cin)
    w_big = jnp.concatenate(rows, axis=0).astype(compute_dtype)     # (M, 3Cin)
    b_big = jnp.tile(bias, ratio).reshape(M, 1).astype(jnp.float32)

    # ---- computed VMEM budget with headroom, capped at v7x's 64 MiB. --------
    need = (2 * Cin * TL * x_size + 2 * M * TL * o_size
            + M * 3 * Cin * cd_size + _round_up(M, 8) * 128 * 4
            + B * T * _round_up(Cin, 8) * 128 * 4
            + 3 * Cin * TL * (4 + cd_size) + M * TL * 4 + 2 * Cin * TL * 4)
    vmem_limit = int(min(max(1.5 * need + (8 << 20), 32 << 20), 64 << 20))

    precision = (lax.Precision.HIGHEST
                 if jnp.dtype(compute_dtype) == jnp.dtype(jnp.float32)
                 else lax.Precision.DEFAULT)
    kern = partial(_upsample_kernel, length=L, tile_l=TL, precision=precision)

    out_pm = pl.pallas_call(
        kern,
        out_shape=jax.ShapeDtypeStruct((B, M, Lp), out_dtype),
        grid=(B, T),
        in_specs=[
            pl.BlockSpec((1, Cin, TL), lambda b, t: (b, 0, t)),
            pl.BlockSpec((B * T, Cin, 2), lambda b, t: (0, 0, 0)),   # resident
            pl.BlockSpec((M, 3 * Cin), lambda b, t: (0, 0)),         # resident
            pl.BlockSpec((M, 1), lambda b, t: (0, 0)),               # resident
        ],
        out_specs=pl.BlockSpec((1, M, TL), lambda b, t: (b, 0, t)),
        compiler_params=pltpu.CompilerParams(
            dimension_semantics=("parallel", "parallel"),
            vmem_limit_bytes=vmem_limit,
        ),
    )(x, halo, w_big, b_big)

    # Phase interleave: out[b, co, q*ratio + r] = out_pm[b, r*Cout + co, q].
    # TODO(synk): this transpose is the one remaining extra HBM pass; fuse it
    # into the kernel (element-granularity lane shuffle / strided lane stores)
    # or let the next layer consume phase-major data directly.
    out = (out_pm.reshape(B, ratio, Cout, Lp)
                 .transpose(0, 2, 3, 1)
                 .reshape(B, Cout, Lp * ratio))
    return out[:, :, :Lout]


# ----------------------------------------------------------------------------
# Pure-JAX reference (zero-insert scatter formulation of ConvTranspose1d)
# ----------------------------------------------------------------------------
def _reference(x, weight, bias, *, ratio):
    B, Cin, L = x.shape
    _, Cout, K = weight.shape
    pad = ratio // 2
    Lout = (L - 1) * ratio - 2 * pad + K
    xa = jnp.where(x >= 0, x, 0.2 * x)
    y = jnp.einsum('bci,cok->boki', xa, weight,
                   precision=lax.Precision.HIGHEST)       # (B, Cout, K, L)
    full = jnp.zeros((B, Cout, (L - 1) * ratio + K), x.dtype)
    for k in range(K):
        full = full.at[:, :, k:k + (L - 1) * ratio + 1:ratio].add(y[:, :, k, :])
    return full[:, :, pad:pad + Lout] + bias[None, :, None]


if __name__ == "__main__":
    key = jax.random.PRNGKey(0)
    configs = [
        # (B, Cin, Cout, L, ratio, tile_l)
        (2, 16, 32, 256, 2, None),    # single tile (auto tile size)
        (2, 16, 32, 256, 2, 128),     # two tiles -> exercises the halo path
        (1, 16, 16, 200, 4, 128),     # ragged tail (L % TL != 0) + ratio 4
    ]
    for ci, (B, Cin, Cout, L, ratio, tile_l) in enumerate(configs):
        key, k1, k2, k3 = jax.random.split(key, 4)
        K = 2 * ratio
        x = jax.random.normal(k1, (B, Cin, L), dtype=jnp.float32)
        weight = 0.1 * jax.random.normal(k2, (Cin, Cout, K), dtype=jnp.float32)
        bias = 0.1 * jax.random.normal(k3, (Cout,), dtype=jnp.float32)

        ref = _reference(x, weight, bias, ratio=ratio)

        # Fast path: bf16 MXU operands, f32 accumulation.
        out_bf16 = jax.block_until_ready(
            upsample_layer(x, weight, bias, ratio=ratio, tile_l=tile_l))
        assert out_bf16.shape == ref.shape == (B, Cout, L * ratio), (
            out_bf16.shape, ref.shape)
        err_bf16 = float(jnp.max(jnp.abs(out_bf16 - ref)))
        assert jnp.allclose(out_bf16, ref, atol=2e-2, rtol=2e-2), (ci, err_bf16)

        # Full f32 path, tight tolerance.
        out_f32 = jax.block_until_ready(
            upsample_layer(x, weight, bias, ratio=ratio, tile_l=tile_l,
                           compute_dtype=jnp.float32))
        err_f32 = float(jnp.max(jnp.abs(out_f32 - ref)))
        assert jnp.allclose(out_f32, ref, atol=5e-4, rtol=5e-4), (ci, err_f32)

    print("KERNEL_OK")
</pallas_src>

<mosaic_0001>
module attributes {stable_mosaic.version = 11 : i64} {
  func.func @_upsample_kernel(%arg0: i32, %arg1: i32, %arg2: memref<1x16x256xf32, #tpu.memory_space<vmem>>, %arg3: memref<2x16x2xf32, #tpu.memory_space<vmem>>, %arg4: memref<64x48xbf16, #tpu.memory_space<vmem>>, %arg5: memref<64x1xf32, #tpu.memory_space<vmem>>, %arg6: memref<1x64x256xf32, #tpu.memory_space<vmem>>) attributes {dimension_semantics = [#tpu.dimension_semantics<parallel>, #tpu.dimension_semantics<parallel>], iteration_bounds = array<i64: 2, 1>, scalar_prefetch = 0 : i64, scratch_operands = 0 : i64, tpu.core_type = #tpu.core_type<tc>, window_params = [{transform_indices = @transform_0, window_bounds = array<i64: 1, 16, 256>}, {pipeline_mode = #tpu.pipeline_mode<synchronous>, transform_indices = @transform_1, window_bounds = array<i64: 2, 16, 2>}, {pipeline_mode = #tpu.pipeline_mode<synchronous>, transform_indices = @transform_2, window_bounds = array<i64: 64, 48>}, {pipeline_mode = #tpu.pipeline_mode<synchronous>, transform_indices = @transform_3, window_bounds = array<i64: 64, 1>}, {transform_indices = @transform_4, window_bounds = array<i64: 1, 64, 256>}]} {
    %c0 = arith.constant 0 : index
    %c0_0 = arith.constant 0 : index
    %c0_1 = arith.constant 0 : index
    %0 = vector.load %arg2[%c0, %c0_0, %c0_1] : memref<1x16x256xf32, #tpu.memory_space<vmem>>, vector<1x16x256xf32>
    %1 = vector.shape_cast %0 : vector<1x16x256xf32> to vector<16x256xf32>
    %cst = arith.constant 0.000000e+00 : f32
    %2 = vector.broadcast %cst : f32 to vector<16x256xf32>
    %3 = arith.cmpf oge, %1, %2 : vector<16x256xf32>
    %cst_2 = arith.constant 2.000000e-01 : f32
    %4 = vector.broadcast %cst_2 : f32 to vector<16x256xf32>
    %5 = arith.mulf %4, %1 : vector<16x256xf32>
    %6 = arith.select %3, %1, %5 : vector<16x256xi1>, vector<16x256xf32>
    %c1_i32 = arith.constant 1 : i32
    %7 = arith.muli %arg0, %c1_i32 : i32
    %8 = arith.addi %7, %arg1 : i32
    %9 = arith.index_cast %8 : i32 to index
    %c0_3 = arith.constant 0 : index
    %c0_4 = arith.constant 0 : index
    %10 = vector.load %arg3[%9, %c0_3, %c0_4] : memref<2x16x2xf32, #tpu.memory_space<vmem>>, vector<1x16x2xf32>
    %11 = vector.shape_cast %10 : vector<1x16x2xf32> to vector<16x2xf32>
    %cst_5 = arith.constant 0.000000e+00 : f32
    %12 = vector.broadcast %cst_5 : f32 to vector<16x2xf32>
    %13 = arith.cmpf oge, %11, %12 : vector<16x2xf32>
    %cst_6 = arith.constant 2.000000e-01 : f32
    %14 = vector.broadcast %cst_6 : f32 to vector<16x2xf32>
    %15 = arith.mulf %14, %11 : vector<16x2xf32>
    %16 = arith.select %13, %11, %15 : vector<16x2xi1>, vector<16x2xf32>
    %17 = vector.extract_strided_slice %16 {offsets = [0, 0], sizes = [16, 1], strides = [1, 1]} : vector<16x2xf32> to vector<16x1xf32>
    %18 = vector.extract_strided_slice %16 {offsets = [0, 1], sizes = [16, 1], strides = [1, 1]} : vector<16x2xf32> to vector<16x1xf32>
    %19 = vector.extract_strided_slice %6 {offsets = [0, 0], sizes = [16, 255], strides = [1, 1]} : vector<16x256xf32> to vector<16x255xf32>
    %20 = tpu.concatenate %17, %19 in 1 : vector<16x1xf32>, vector<16x255xf32> -> vector<16x256xf32>
    %21 = vector.extract_strided_slice %6 {offsets = [0, 1], sizes = [16, 255], strides = [1, 1]} : vector<16x256xf32> to vector<16x255xf32>
    %22 = tpu.concatenate %21, %18 in 1 : vector<16x255xf32>, vector<16x1xf32> -> vector<16x256xf32>
    %23 = tpu.concatenate %6, %20, %22 in 0 : vector<16x256xf32>, vector<16x256xf32>, vector<16x256xf32> -> vector<48x256xf32>
    %24 = arith.truncf %23 : vector<48x256xf32> to vector<48x256xbf16>
    %c0_7 = arith.constant 0 : index
    %c0_8 = arith.constant 0 : index
    %25 = vector.load %arg4[%c0_7, %c0_8] : memref<64x48xbf16, #tpu.memory_space<vmem>>, vector<64x48xbf16>
    %cst_9 = arith.constant dense<0.000000e+00> : vector<64x256xf32>
    %26 = tpu.matmul %25, %24, %cst_9 {dimension_numbers = #tpu.dot_dimension_numbers<[1], [0], [0], [1], [0, 0, 1, 1], [], []>} : vector<64x48xbf16>, vector<48x256xbf16>, vector<64x256xf32> -> vector<64x256xf32>
    %c0_10 = arith.constant 0 : index
    %c0_11 = arith.constant 0 : index
    %27 = vector.load %arg5[%c0_10, %c0_11] : memref<64x1xf32, #tpu.memory_space<vmem>>, vector<64x1xf32>
    %28 = vector.shape_cast %27 : vector<64x1xf32> to vector<64x1xf32>
    %29 = vector.broadcast %28 : vector<64x1xf32> to vector<64x256xf32>
    %30 = arith.addf %26, %29 : vector<64x256xf32>
    %c0_12 = arith.constant 0 : index
    %c0_13 = arith.constant 0 : index
    %c0_14 = arith.constant 0 : index
    %31 = vector.load %arg6[%c0_12, %c0_13, %c0_14] : memref<1x64x256xf32, #tpu.memory_space<vmem>>, vector<1x64x256xf32>
    %32 = vector.shape_cast %31 : vector<1x64x256xf32> to vector<64x256xf32>
    %33 = vector.shape_cast %30 : vector<64x256xf32> to vector<1x64x256xf32>
    tpu.vector_store %arg6[%c0_12, %c0_13, %c0_14], %33 {strides = array<i32>} : memref<1x64x256xf32, #tpu.memory_space<vmem>>, vector<1x64x256xf32>,
    return
  }
  func.func @transform_0(%arg0: i32, %arg1: i32) -> (i32, i32, i32) {
    %c0_i32 = arith.constant 0 : i32
    %c0_i32_0 = arith.constant 0 : i32
    return %arg0, %c0_i32, %arg1 : i32, i32, i32
  }
  func.func @transform_1(%arg0: i32, %arg1: i32) -> (i32, i32, i32) {
    %c0_i32 = arith.constant 0 : i32
    %c0_i32_0 = arith.constant 0 : i32
    %c0_i32_1 = arith.constant 0 : i32
    %c0_i32_2 = arith.constant 0 : i32
    return %c0_i32, %c0_i32_0, %c0_i32_1 : i32, i32, i32
  }
  func.func @transform_2(%arg0: i32, %arg1: i32) -> (i32, i32) {
    %c0_i32 = arith.constant 0 : i32
    %c0_i32_0 = arith.constant 0 : i32
    %c0_i32_1 = arith.constant 0 : i32
    return %c0_i32, %c0_i32_0 : i32, i32
  }
  func.func @transform_3(%arg0: i32, %arg1: i32) -> (i32, i32) {
    %c0_i32 = arith.constant 0 : i32
    %c0_i32_0 = arith.constant 0 : i32
    %c0_i32_1 = arith.constant 0 : i32
    return %c0_i32, %c0_i32_0 : i32, i32
  }
  func.func @transform_4(%arg0: i32, %arg1: i32) -> (i32, i32, i32) {
    %c0_i32 = arith.constant 0 : i32
    %c0_i32_0 = arith.constant 0 : i32
    return %arg0, %c0_i32, %arg1 : i32, i32, i32
  }
}

</mosaic_0001>

<llo_original>
// kernel: tpu_custom_call.1
$region0: #{tpu_custom_call.1}
  #allocation0 [shape = 'u32[]', space=smem, size = 0x4, offset = 0x4, fixed_abs, tag = 'smem constant byte address 0x4 - core index']
  #allocation1 [shape = 'u32[144,128]{1,0:T(1,128)}', space=vmem, size = 0x12000, scoped, tag = 'internal scratch']
  %s0 = inlined_call_operand.vmem [shape: f32[2,16,256], index: 0, kind: input, shape index: {}]
  %s1 = inlined_call_operand.vmem [shape: f32[2,16,2], index: 1, kind: input, shape index: {}]
  %s2 = inlined_call_operand.vmem [shape: bf16[64,48], index: 2, kind: input, shape index: {}]
  %s3 = inlined_call_operand.vmem [shape: f32[64,1], index: 3, kind: input, shape index: {}]
  %s4 = inlined_call_operand.hbm [shape: f32[2,64,256], index: 4, kind: output, shape index: {}]
  %s5 = sld [smem:[#allocation0]]
  $region49: #{tpu_custom_call.1} parent=0
    _
  %s7 = ssub.s32 1, %s5
  %s8 = scalar_select 0, %s7, %s5
  $region1: #{tpu_custom_call.1} parent=0
    #allocation2 [shape = 'u8[131072]{0}', space=vmem, size = 0x20000, scoped, tag = 'output window, operand 0']
    #allocation3 [shape = 's32[2]{0}', space=sflag, size = 0x8, scoped, tag = 'scoped memory for tpu_custom_call.1']
    %9 = vsyncpa [#allocation3], 0
    %s10 = scalar_lea.sflag [#allocation3], 1
    %11 = vsyncpa %s10, 0
    loop: start=0, step=1, limit=4
    $region2: #{tpu_custom_call.1} parent=1 // loop_pre_header
      _
    $region3: #{tpu_custom_call.1} parent=1 // loop_header
      %s13 = sphi 0, %s17
      %p14 = scmp.ge.s32.totalorder %s13, 4
      %s20 = sphi 0, %s32
      %s21 = sphi 0, %s28
      %s22 = sphi 0, %s20
      %s23 = sphi 0, %s21
      %s24 = sphi 0, %s22
      %s25 = sphi 0, %s23
      %s37 = sphi 0, %s39
      %s40 = sphi 0, %s37
      %s41 = sphi 0, %s40
      %s57 = sphi 0, %s41
      %s61 = sphi 0, %s61
      %s63 = sphi 0, %s61
      %s64 = sphi 0, %s63
      %s78 = sphi 0, %s64
      %s82 = sphi 0, %s82
      %s84 = sphi 0, %s82
      %s85 = sphi 0, %s84
      %s99 = sphi 0, %s85
      %s103 = sphi 0, %s103
      %s105 = sphi 0, %s103
      %s106 = sphi 0, %s105
      %s120 = sphi 0, %s106
      %s128 = sphi 0, %s130
      %s131 = sphi 0, %s128
      %s132 = sphi 0, %s131
      %s148 = sphi 0, %s132
    $region4: #{tpu_custom_call.1} parent=1 // loop_header_branch
      %16 = sbr.rel (%p14) target = $region8
    $region5: #{tpu_custom_call.1} parent=1 // loop_body
      %s18 = ssub.s32 %s13, 1
      %s19 = ssub.s32 %s13, 2
      %s26 = sadd.s32 1, %s21
      %p27 = scmp.ge.s32.totalorder %s26, 1
      %s28 = scalar_select %p27, 0, %s26
      %s29 = sadd.s32 1, %s20
      %s30 = scalar_select %p27, %s29, %s20
      %p31 = scmp.ge.s32.totalorder %s30, 2
      %s32 = scalar_select %p31, 0, %s30
      %s33 = ssub.s32 %s20, %s32
      %s34 = ssub.s32 %s21, %s28
      %s35 = sor.u32 %s33, %s34
      %p36 = scmp.eq.s32.totalorder %s35, 0
      %s38 = sadd.s32 %s37, 1
      %s39 = scalar_select %p36, %s37, %s38
      %p42 = pneg %p36
      %p43 = scmp.eq.s32.totalorder %s13, 1
      %p44 = por %p42, %p43
      %p45 = scmp.ne.s32.totalorder %s37, %s40
      %p46 = scmp.eq.s32.totalorder %s13, 0
      %p47 = por %p45, %p46
      %p48 = scmp.ne.s32.totalorder %s37, %s40
      %p49 = scmp.eq.s32.totalorder %s18, 1
      %p50 = por %p48, %p49
      %p51 = scmp.ne.s32.totalorder %s40, %s41
      %p52 = scmp.eq.s32.totalorder %s18, 0
      %p53 = por %p51, %p52
      %p54 = scmp.ne.s32.totalorder %s40, %s41
      %p55 = scmp.eq.s32.totalorder %s19, 1
      %p56 = por %p54, %p55
      %p58 = scmp.ne.s32.totalorder %s41, %s57
      %p59 = scmp.eq.s32.totalorder %s19, 0
      %p60 = por %p58, %p59
      %s62 = sadd.s32 %s61, 1
      %p65 = scmp.eq.s32.totalorder %s13, 1
      %p66 = scmp.ne.s32.totalorder %s61, %s63
      %p67 = scmp.eq.s32.totalorder %s13, 0
      %p68 = por %p66, %p67
      %p69 = scmp.ne.s32.totalorder %s61, %s63
      %p70 = scmp.eq.s32.totalorder %s18, 1
      %p71 = por %p69, %p70
      %p72 = scmp.ne.s32.totalorder %s63, %s64
      %p73 = scmp.eq.s32.totalorder %s18, 0
      %p74 = por %p72, %p73
      %p75 = scmp.ne.s32.totalorder %s63, %s64
      %p76 = scmp.eq.s32.totalorder %s19, 1
      %p77 = por %p75, %p76
      %p79 = scmp.ne.s32.totalorder %s64, %s78
      %p80 = scmp.eq.s32.totalorder %s19, 0
      %p81 = por %p79, %p80
      %s83 = sadd.s32 %s82, 1
      %p86 = scmp.eq.s32.totalorder %s13, 1
      %p87 = scmp.ne.s32.totalorder %s82, %s84
      %p88 = scmp.eq.s32.totalorder %s13, 0
      %p89 = por %p87, %p88
      %p90 = scmp.ne.s32.totalorder %s82, %s84
      %p91 = scmp.eq.s32.totalorder %s18, 1
      %p92 = por %p90, %p91
      %p93 = scmp.ne.s32.totalorder %s84, %s85
      %p94 = scmp.eq.s32.totalorder %s18, 0
      %p95 = por %p93, %p94
      %p96 = scmp.ne.s32.totalorder %s84, %s85
      %p97 = scmp.eq.s32.totalorder %s19, 1
      %p98 = por %p96, %p97
      %p100 = scmp.ne.s32.totalorder %s85, %s99
      %p101 = scmp.eq.s32.totalorder %s19, 0
      %p102 = por %p100, %p101
      %s104 = sadd.s32 %s103, 1
      %p107 = scmp.eq.s32.totalorder %s13, 1
      %p108 = scmp.ne.s32.totalorder %s103, %s105
      %p109 = scmp.eq.s32.totalorder %s13, 0
      %p110 = por %p108, %p109
      %p111 = scmp.ne.s32.totalorder %s103, %s105
      %p112 = scmp.eq.s32.totalorder %s18, 1
      %p113 = por %p111, %p112
      %p114 = scmp.ne.s32.totalorder %s105, %s106
      %p115 = scmp.eq.s32.totalorder %s18, 0
      %p116 = por %p114, %p115
      %p117 = scmp.ne.s32.totalorder %s105, %s106
      %p118 = scmp.eq.s32.totalorder %s19, 1
      %p119 = por %p117, %p118
      %p121 = scmp.ne.s32.totalorder %s106, %s120
      %p122 = scmp.eq.s32.totalorder %s19, 0
      %p123 = por %p121, %p122
      %s124 = ssub.s32 %s20, %s32
      %s125 = ssub.s32 %s21, %s28
      %s126 = sor.u32 %s124, %s125
      %p127 = scmp.eq.s32.totalorder %s126, 0
      %s129 = sadd.s32 %s128, 1
      %s130 = scalar_select %p127, %s128, %s129
      %p133 = pneg %p127
      %p134 = scmp.eq.s32.totalorder %s13, 1
      %p135 = por %p133, %p134
      %p136 = scmp.ne.s32.totalorder %s128, %s131
      %p137 = scmp.eq.s32.totalorder %s13, 0
      %p138 = por %p136, %p137
      %p139 = scmp.ne.s32.totalorder %s128, %s131
      %p140 = scmp.eq.s32.totalorder %s18, 1
      %p141 = por %p139, %p140
      %p142 = scmp.ne.s32.totalorder %s131, %s132
      %p143 = scmp.eq.s32.totalorder %s18, 0
      %p144 = por %p142, %p143
      %p145 = scmp.ne.s32.totalorder %s131, %s132
      %p146 = scmp.eq.s32.totalorder %s19, 1
      %p147 = por %p145, %p146
      %p149 = scmp.ne.s32.totalorder %s132, %s148
      %p150 = scmp.eq.s32.totalorder %s19, 0
      %p151 = por %p149, %p150
      %p152 = scmp.le.s32.totalorder 1, %s13
      %p153 = scmp.lt.s32.totalorder %s13, 3
      %p154 = pnand %p152, %p153
      %p155 = pneg %p154
      // Predicated region
      $region9: #{tpu_custom_call.1} parent=5 // pred_check
        _
      $region10: #{tpu_custom_call.1} parent=5 // pred_check_branch
        %157 = sbr.rel (%p154) target = $region12
      $region11: #{tpu_custom_call.1} parent=5 // pred_region
        %s158 = ssub.s32 %s13, 1
        // Predicated region
        $region13: #{tpu_custom_call.1} parent=11 // pred_check
          %p159 = pneg %p74
        $region14: #{tpu_custom_call.1} parent=11 // pred_check_branch
          %161 = sbr.rel (%p159) target = $region16
        $region15: #{tpu_custom_call.1} parent=11 // pred_region
          _
        $region16: #{tpu_custom_call.1} parent=11 // pred_fallthru
          _
        // Predicated region
        $region17: #{tpu_custom_call.1} parent=11 // pred_check
          %p162 = pneg %p95
        $region18: #{tpu_custom_call.1} parent=11 // pred_check_branch
          %164 = sbr.rel (%p162) target = $region20
        $region19: #{tpu_custom_call.1} parent=11 // pred_region
          _
        $region20: #{tpu_custom_call.1} parent=11 // pred_fallthru
          _
        // Predicated region
        $region21: #{tpu_custom_call.1} parent=11 // pred_check
          %p165 = pneg %p116
        $region22: #{tpu_custom_call.1} parent=11 // pred_check_branch
          %167 = sbr.rel (%p165) target = $region24
        $region23: #{tpu_custom_call.1} parent=11 // pred_region
          _
        $region24: #{tpu_custom_call.1} parent=11 // pred_fallthru
          _
      $region12: #{tpu_custom_call.1} parent=5 // pred_fallthru
        _
      %p168 = scmp.lt.s32.totalorder %s13, 2
      // Predicated region
      $region25: #{tpu_custom_call.1} parent=5 // pred_check
        %p169 = pneg %p168
      $region26: #{tpu_custom_call.1} parent=5 // pred_check_branch
        %171 = sbr.rel (%p169) target = $region28
      $region27: #{tpu_custom_call.1} parent=5 // pred_region
        // Predicated region
        $region29: #{tpu_custom_call.1} parent=27 // pred_check
          %p172 = pneg %p47
        $region30: #{tpu_custom_call.1} parent=27 // pred_check_branch
          %174 = sbr.rel (%p172) target = $region32
        $region31: #{tpu_custom_call.1} parent=27 // pred_region
          %s175 = smul.u32 2, %s21
          %p176 = scmp.lt.s32.totalorder %s20, 1
          %s177 = scalar_select %p176, %s20, 1
          %p178 = scmp.lt.s32.totalorder %s175, 1
          %s179 = scalar_select %p178, %s175, 1
          %s180 = smul.addr %s177, 4
          %s181 = sadd.s32 %s179, %s180
          %s182 = smul.addr %s181, 8
          %s183 = scalar_lea.vmem %s0, %s182
          %s184 = smul.u32 2, %s21
        $region32: #{tpu_custom_call.1} parent=27 // pred_fallthru
          _
      $region28: #{tpu_custom_call.1} parent=5 // pred_fallthru
        _
      %p185 = scmp.le.s32.totalorder 1, %s13
      %p186 = scmp.lt.s32.totalorder %s13, 3
      %p187 = pnand %p185, %p186
      %p188 = pneg %p187
      // Predicated region
      $region33: #{tpu_custom_call.1} parent=5 // pred_check
        _
      $region34: #{tpu_custom_call.1} parent=5 // pred_check_branch
        %190 = sbr.rel (%p187) target = $region36
      $region35: #{tpu_custom_call.1} parent=5 // pred_region
        %s191 = ssub.s32 %s13, 1
        %s192 = smul.u32 2, %s23
        %p193 = scmp.lt.s32.totalorder %s22, 1
        %s194 = scalar_select %p193, %s22, 1
        %p195 = scmp.lt.s32.totalorder %s192, 1
        %s196 = scalar_select %p195, %s192, 1
        %s197 = smul.addr %s194, 4
        %s198 = sadd.s32 %s196, %s197
        %s199 = smul.addr %s198, 8
        %s200 = scalar_lea.vmem %s0, %s199
        %p201 = pneg %p53
        %p202 = pneg %p50
        %p203 = pneg %p74
        %p204 = pneg %p71
        %p205 = pneg %p95
        %p206 = pneg %p92
        %p207 = pneg %p116
        %p208 = pneg %p113
        %p209 = pneg %p144
        %p210 = pneg %p141
        %s211 = sand.u32 %s131, 1
        %s212 = scalar_lea.sflag [#allocation3], %s211
        %s213 = sand.u32 %s131, 1
        %s214 = smul.addr %s213, 128
        %s215 = scalar_lea.vmem [#allocation2], %s214
        %s216 = smul.u32 2, %s23
        %p217 = scmp.lt.s32.totalorder %s22, 1
        %s218 = scalar_select %p217, %s22, 1
        %p219 = scmp.lt.s32.totalorder %s216, 1
        %s220 = scalar_select %p219, %s216, 1
        %s221 = smul.addr %s218, 4
        %s222 = sadd.s32 %s220, %s221
        %s223 = smul.addr %s222, 8
        %s224 = scalar_lea.vmem %s0, %s223
        %s225 = smul.u32 2, %s23
        %s226 = smul.u32 2, %s23
        %v228 = vld [vmem:[%s224] sm:$0xff]
        %v229 = vld [vmem:[%s224 + $0x8] sm:$0xff]
        %v230 = vld [vmem:[%s224 + $0x10] sm:$0xff]
        %v231 = vld [vmem:[%s224 + $0x18] sm:$0xff]
        %vm232 = vcmp.ge.f32.partialorder %v228, 0.0
        %vm233 = vcmp.ge.f32.partialorder %v229, 0.0
        %vm234 = vcmp.ge.f32.partialorder %v230, 0.0
        %vm235 = vcmp.ge.f32.partialorder %v231, 0.0
        %v236 = vmul.f32 %v228, 0.2
        %v237 = vmul.f32 %v229, 0.2
        %v238 = vmul.f32 %v230, 0.2
        %v239 = vmul.f32 %v231, 0.2
        %v240 = vsel %vm232, %v228, %v236
        %v241 = vsel %vm233, %v229, %v237
        %v242 = vsel %vm234, %v230, %v238
        %v243 = vsel %vm235, %v231, %v239
        %s244 = sadd.s32 %s22, %s23
        %s245 = smul.u32 %s244, 16
        %s246 = scalar_lea.vmem %s1, %s245
        %v247 = vld [vmem:[%s246] sm:$0xff]
        %v248 = vld [vmem:[%s246 + $0x8] sm:$0xff]
        %vm249 = vcmp.ge.f32.partialorder %v247, 0.0
        %vm250 = vcmp.ge.f32.partialorder %v248, 0.0
        %v251 = vmul.f32 %v247, 0.2
        %v252 = vmul.f32 %v248, 0.2
        %v253 = vsel %vm249, %v247, %v251
        %v254 = vsel %vm250, %v248, %v252
        %259 = vrot.lane.b32.xlu0 %v240, 1
        %v260 = vpop.permute.xlu0 %259
        %261 = vrot.lane.b32.xlu0 %v241, 1
        %v262 = vpop.permute.xlu0 %261
        %263 = vrot.lane.b32.xlu0 %v242, 1
        %v264 = vpop.permute.xlu0 %263
        %265 = vrot.lane.b32.xlu0 %v243, 1
        %v266 = vpop.permute.xlu0 %265
        %vm267 = vcmask 7168
        %v268 = vsel %vm267, %v260, %v262
        %v269 = vsel %vm267, %v264, %v266
        %v274 = vsel %vm267, %v253, %v260
        %v275 = vsel %vm267, %v254, %v264
        %276 = vrot.lane.b32.xlu0 %v240, 127
        %v277 = vpop.permute.xlu0 %276
        %278 = vrot.lane.b32.xlu0 %v241, 127
        %v279 = vpop.permute.xlu0 %278
        %280 = vrot.lane.b32.xlu0 %v242, 127
        %v281 = vpop.permute.xlu0 %280
        %282 = vrot.lane.b32.xlu0 %v243, 127
        %v283 = vpop.permute.xlu0 %282
        %vm284 = vcmask 1039360
        %v285 = vsel %vm284, %v277, %v279
        %v286 = vsel %vm284, %v281, %v283
        %293 = vrot.lane.b32.xlu0 %v253, 126
        %v294 = vpop.permute.xlu0 %293
        %295 = vrot.lane.b32.xlu0 %v254, 126
        %v296 = vpop.permute.xlu0 %295
        %v299 = vsel %vm284, %v279, %v294
        %v300 = vsel %vm284, %v283, %v296
        %v301 = vpack.c.bf16 %v242, %v240
        %v302 = vpack.c.bf16 %v243, %v241
        %v303 = vpack.c.bf16 %v275, %v274
        %v304 = vpack.c.bf16 %v269, %v268
        %v305 = vpack.c.bf16 %v286, %v285
        %v306 = vpack.c.bf16 %v300, %v299
        %v307 = vld [vmem:[%s2] sm:$0xf]
        %v308 = vld [vmem:[%s2 + $0x4] sm:$0xf]
        %v309 = vld [vmem:[%s2 + $0x8] sm:$0xf]
        %v310 = vld [vmem:[%s2 + $0xc] sm:$0xf]
        %v311 = vld [vmem:[%s2 + $0x10] sm:$0xf]
        %v312 = vld [vmem:[%s2 + $0x14] sm:$0xf]
        %v313 = vld [vmem:[%s2 + $0x18] sm:$0xf]
        %v314 = vld [vmem:[%s2 + $0x1c] sm:$0xf]
        %v315 = vld [vmem:[%s3] sm:$0xff]
        %v316 = vld [vmem:[%s3 + $0x8] sm:$0xff]
        %v317 = vld [vmem:[%s3 + $0x10] sm:$0xff]
        %v318 = vld [vmem:[%s3 + $0x18] sm:$0xff]
        %v319 = vld [vmem:[%s3 + $0x20] sm:$0xff]
        %v320 = vld [vmem:[%s3 + $0x28] sm:$0xff]
        %v321 = vld [vmem:[%s3 + $0x30] sm:$0xff]
        %v322 = vld [vmem:[%s3 + $0x38] sm:$0xff]
        %324 = vset.pattern.permute.xlu0 0
        %325 = vperm.xlu0 %324, %v315
        %v326 = vpop.permute.xlu0 %325
        %329 = vset.pattern.permute.xlu0 0
        %330 = vperm.xlu0 %329, %v316
        %v331 = vpop.permute.xlu0 %330
        %334 = vset.pattern.permute.xlu0 0
        %335 = vperm.xlu0 %334, %v317
        %v336 = vpop.permute.xlu0 %335
        %339 = vset.pattern.permute.xlu0 0
        %340 = vperm.xlu0 %339, %v318
        %v341 = vpop.permute.xlu0 %340
        %344 = vset.pattern.permute.xlu0 0
        %345 = vperm.xlu0 %344, %v319
        %v346 = vpop.permute.xlu0 %345
        %349 = vset.pattern.permute.xlu0 0
        %350 = vperm.xlu0 %349, %v320
        %v351 = vpop.permute.xlu0 %350
        %354 = vset.pattern.permute.xlu0 0
        %355 = vperm.xlu0 %354, %v321
        %v356 = vpop.permute.xlu0 %355
        %359 = vset.pattern.permute.xlu0 0
        %360 = vperm.xlu0 %359, %v322
        %v361 = vpop.permute.xlu0 %360
        %v371 = vunpack.c.l.b16 %v307
        %v372 = vunpack.c.l.b16 %v308
        %v373 = vunpack.c.l.b16 %v309
        %v374 = vunpack.c.l.b16 %v310
        %v375 = vunpack.c.l.b16 %v311
        %v376 = vunpack.c.l.b16 %v312
        %v377 = vunpack.c.l.b16 %v313
        %v378 = vunpack.c.l.b16 %v314
        %v379 = vpack.c.b16 %v372, %v371
        %v380 = vpack.c.b16 %v374, %v373
        %v381 = vpack.c.b16 %v376, %v375
        %v382 = vpack.c.b16 %v378, %v377
        %vm383 = vcmask 392192
        %v385 = vsel %vm383, %v379, 0
        %v388 = vsel %vm383, %v380, 0
        %v391 = vsel %vm383, %v381, 0
        %v394 = vsel %vm383, %v382, 0
        %396 = vmatprep.subr.bf16.mxu0 %v302
        %397 = vmatpush1.bf16.msra.mxu0 %v301
        %398 = vmatprep.subr.bf16.mxu0 %v304
        %399 = vmatpush1.bf16.msra.mxu0 %v303
        %400 = vmatprep.subr.bf16.mxu0 %v306
        %401 = vmatpush1.bf16.msra.mxu0 %v305
        %402 = vmatprep.subr.bf16.mxu0 0
        %403 = vmatpush1.bf16.msra.mxu0 0
        %404 = vmatprep.subr.bf16.mxu0 0
        %405 = vmatpush1.bf16.msra.mxu0 0
        %406 = vmatprep.subr.bf16.mxu0 0
        %407 = vmatpush1.bf16.msra.mxu0 0
        %408 = vmatprep.subr.bf16.mxu0 0
        %409 = vmatpush1.bf16.msra.mxu0 0
        %410 = vmatprep.subr.bf16.mxu0 0
        %411 = vmatpush1.bf16.msra.mxu0 0
        %412 = vmatprep.subr.bf16.mxu0 0
        %413 = vmatpush1.bf16.msra.mxu0 0
        %414 = vmatprep.subr.bf16.mxu0 0
        %415 = vmatpush1.bf16.msra.mxu0 0
        %416 = vmatprep.subr.bf16.mxu0 0
        %417 = vmatpush1.bf16.msra.mxu0 0
        %418 = vmatprep.subr.bf16.mxu0 0
        %419 = vmatpush1.bf16.msra.mxu0 0
        %420 = vmatprep.subr.bf16.mxu0 0
        %421 = vmatpush1.bf16.msra.mxu0 0
        %422 = vmatprep.subr.bf16.mxu0 0
        %423 = vmatpush1.bf16.msra.mxu0 0
        %424 = vmatprep.subr.bf16.mxu0 0
        %425 = vmatpush1.bf16.msra.mxu0 0
        %426 = vmatprep.subr.bf16.mxu0 0
        %427 = vmatpush1.bf16.msra.mxu0 0
        %428 = vmatprep.mubr.bf16.mxu0 0
        %429 = vmatmul.mubr.bf16.gmra.mrb[0].mxu0 %v385
        %v430 = vpop.f32.mrb[0].mxu0
        %v431 = vadd.f32 %v326, %v430
        %v432 = vpop.f32.mrb[0].mxu0
        %v433 = vadd.f32 %v326, %v432
        %v434 = vpop.f32.mrb[0].mxu0
        %v435 = vadd.f32 %v331, %v434
        %v436 = vpop.f32.mrb[0].mxu0
        %v437 = vadd.f32 %v331, %v436
        %438 = vmatprep.mubr.bf16.mxu0 0
        %439 = vmatmul.mubr.bf16.gmra.mrb[0].mxu0 %v388
        %v440 = vpop.f32.mrb[0].mxu0
        %v441 = vadd.f32 %v336, %v440
        %v442 = vpop.f32.mrb[0].mxu0
        %v443 = vadd.f32 %v336, %v442
        %v444 = vpop.f32.mrb[0].mxu0
        %v445 = vadd.f32 %v341, %v444
        %v446 = vpop.f32.mrb[0].mxu0
        %v447 = vadd.f32 %v341, %v446
        %448 = vmatprep.mubr.bf16.mxu0 0
        %449 = vmatmul.mubr.bf16.gmra.mrb[0].mxu0 %v391
        %v450 = vpop.f32.mrb[0].mxu0
        %v451 = vadd.f32 %v346, %v450
        %v452 = vpop.f32.mrb[0].mxu0
        %v453 = vadd.f32 %v346, %v452
        %v454 = vpop.f32.mrb[0].mxu0
        %v455 = vadd.f32 %v351, %v454
        %v456 = vpop.f32.mrb[0].mxu0
        %v457 = vadd.f32 %v351, %v456
        %458 = vmatprep.mubr.bf16.mxu0 0
        %459 = vmatmul.mubr.bf16.gmra.mrb[0].mxu0 %v394
        %v460 = vpop.f32.mrb[0].mxu0
        %v461 = vadd.f32 %v356, %v460
        %v462 = vpop.f32.mrb[0].mxu0
        %v463 = vadd.f32 %v356, %v462
        %v464 = vpop.f32.mrb[0].mxu0
        %v465 = vadd.f32 %v361, %v464
        %v466 = vpop.f32.mrb[0].mxu0
        %v467 = vadd.f32 %v361, %v466
        %468 = vdwg.mxu0
        %469 = vst [vmem:[%s215] sm:$0xff] %v431
        %470 = vst [vmem:[%s215 + $0x8] sm:$0xff] %v433
        %471 = vst [vmem:[%s215 + $0x10] sm:$0xff] %v435
        %472 = vst [vmem:[%s215 + $0x18] sm:$0xff] %v437
        %473 = vst [vmem:[%s215 + $0x20] sm:$0xff] %v441
        %474 = vst [vmem:[%s215 + $0x28] sm:$0xff] %v443
        %475 = vst [vmem:[%s215 + $0x30] sm:$0xff] %v445
        %476 = vst [vmem:[%s215 + $0x38] sm:$0xff] %v447
        %477 = vst [vmem:[%s215 + $0x40] sm:$0xff] %v451
        %478 = vst [vmem:[%s215 + $0x48] sm:$0xff] %v453
        %479 = vst [vmem:[%s215 + $0x50] sm:$0xff] %v455
        %480 = vst [vmem:[%s215 + $0x58] sm:$0xff] %v457
        %481 = vst [vmem:[%s215 + $0x60] sm:$0xff] %v461
        %482 = vst [vmem:[%s215 + $0x68] sm:$0xff] %v463
        %483 = vst [vmem:[%s215 + $0x70] sm:$0xff] %v465
        %484 = vst [vmem:[%s215 + $0x78] sm:$0xff] %v467
        %s485 = sand.u32 %s131, 1
        %s486 = scalar_lea.sflag [#allocation3], %s485
        %s487 = sand.u32 %s131, 1
        %s488 = smul.addr %s487, 128
        %s489 = scalar_lea.vmem [#allocation2], %s488
        // Predicated region
        $region37: #{tpu_custom_call.1} parent=35 // pred_check
          %p490 = pneg %p141
        $region38: #{tpu_custom_call.1} parent=35 // pred_check_branch
          %492 = sbr.rel (%p490) target = $region40
        $region39: #{tpu_custom_call.1} parent=35 // pred_region
          %s493 = smul.u32 2, %s23
          %s495 = ssub.s32 2048, 2048
          %496 = vsyncadd %s486, %s495
          %s497 = smul.addr %s22, 16
          %s498 = sadd.s32 %s493, %s497
          %s499 = smul.addr %s498, 128
          %s500 = scalar_lea.hbm %s4, %s499
          %s501 = sshll.u32 %s489, 4
          %s502 = int_to_ptr.vmem [resolvable:$true] %s501
          %507 = dma.vmem_to_hbm [thread:$0]  %s502, 2048, %s500, %s486, 256, 256, 16
        $region40: #{tpu_custom_call.1} parent=35 // pred_fallthru
          _
      $region36: #{tpu_custom_call.1} parent=5 // pred_fallthru
        _
      %p508 = scmp.le.s32.totalorder 2, %s13
      // Predicated region
      $region41: #{tpu_custom_call.1} parent=5 // pred_check
        %p509 = pneg %p508
      $region42: #{tpu_custom_call.1} parent=5 // pred_check_branch
        %511 = sbr.rel (%p509) target = $region44
      $region43: #{tpu_custom_call.1} parent=5 // pred_region
        %s512 = ssub.s32 %s13, 2
        // Predicated region
        $region45: #{tpu_custom_call.1} parent=43 // pred_check
          %p513 = pneg %p147
        $region46: #{tpu_custom_call.1} parent=43 // pred_check_branch
          %515 = sbr.rel (%p513) target = $region48
        $region47: #{tpu_custom_call.1} parent=43 // pred_region
          %s516 = sand.u32 %s132, 1
          %s517 = scalar_lea.sflag [#allocation3], %s516
          %s518 = sand.u32 %s132, 1
          %s519 = smul.addr %s518, 128
          %s520 = scalar_lea.vmem [#allocation2], %s519
          %521 = dma.done %s517, 2048
        $region48: #{tpu_custom_call.1} parent=43 // pred_fallthru
          _
      $region44: #{tpu_custom_call.1} parent=5 // pred_fallthru
        _
    $region6: #{tpu_custom_call.1} parent=1 // loop_footer
      %s17 = sadd.s32 1, %s13
    $region7: #{tpu_custom_call.1} parent=1 // loop_footer_branch
      %12 = sbr.rel target = $region3
    $region8: #{tpu_custom_call.1} parent=1 // loop_exit
      _
    %522 = vsyncpa [#allocation3], 1
    %s523 = scalar_lea.sflag [#allocation3], 1
    %524 = vsyncpa %s523, 1

</llo_original>
